<compile_context>
chip_gen: v5e
topology: v5e:2x2
jax: 0.10.0
libtpu: 0.0.40
codegen_flags: <defaults>
</compile_context>

<pallas_src>
import math

import jax
import jax.numpy as jnp
from jax import lax
from jax.experimental import pallas as pl
from jax.experimental.pallas import tpu as pltpu


# ----------------------------------------------------------------------------
# kernels
# ----------------------------------------------------------------------------
def _attn_core(q, k, v, o_ref, s_ref, mask=None):
    """q: [G, tq, D]; k, v: [G, L, D]; mask: [1|G, tq, L] int8 or None."""
    d_k = q.shape[-1]
    # Fold 1/sqrt(d_k) into q: tq*D VPU muls instead of tq*L on the score tile.
    qs = q * (1.0 / math.sqrt(d_k))

    # score[g, i, j] = sum_d q[g, i, d] * k[g, j, d] -- contraction on the last dim of both
    # operands (lhs . rhs^T form): MXU fed directly, no XLU transpose of K.
    s = lax.dot_general(
        qs, k,
        dimension_numbers=(((2,), (2,)), ((0,), (0,))),
        preferred_element_type=jnp.float32)

    if mask is not None:
        # Direct int8 compare: no full-tile int8->f32 cast, broadcasts over the G axis.
        s = jnp.where(mask != 0, s, -jnp.inf)

    # Numerically stable row softmax.  Fully-masked rows give NaN, matching
    # torch masked_fill(-inf) + softmax semantics.
    s_max = jnp.max(s, axis=-1, keepdims=True)
    p = jnp.exp(s - s_max)
    denom = jnp.sum(p, axis=-1, keepdims=True)
    inv = pl.reciprocal(denom)                 # exact: stored score rows sum to ~1 like torch

    # Single low-precision cast of p, reused for the score store AND the PV matmul
    # (lets the f32 p die before the second matmul).
    p_lo = (p * inv).astype(s_ref.dtype)
    s_ref[...] = p_lo

    o_ref[...] = lax.dot_general(
        p_lo.astype(v.dtype), v,
        dimension_numbers=(((2,), (1,)), ((0,), (0,))),
        preferred_element_type=jnp.float32).astype(o_ref.dtype)


def _sdpa_kernel_masked(q_ref, k_ref, v_ref, m_ref, o_ref, s_ref):
    _attn_core(q_ref[...], k_ref[...], v_ref[...], o_ref, s_ref, mask=m_ref[...])


def _sdpa_kernel_nomask(q_ref, k_ref, v_ref, o_ref, s_ref):
    _attn_core(q_ref[...], k_ref[...], v_ref[...], o_ref, s_ref, mask=None)


# ----------------------------------------------------------------------------
# hardware-aware tiling heuristics
# ----------------------------------------------------------------------------
def _vmem_capacity_bytes():
    """Physical VMEM per TensorCore; conservative fallback if the query is unavailable."""
    try:
        cap = int(pltpu.get_tpu_info().vmem_capacity_bytes)
        if cap > 0:
            return cap
    except Exception:
        pass
    return 64 * 1024 * 1024        # v7x-sized conservative default


def _tq_candidates(L):
    """Query-length tiles: full L for moderate lengths, else sublane-friendly divisors."""
    cands = []
    if L <= 512:
        cands.append(L)
    for t in (512, 256, 128, 64, 32, 16, 8):
        if t < L and L % t == 0:
            cands.append(t)
    if not cands:
        # TODO(synk): pad ragged/prime L to a multiple of 128 instead of one full-L tile.
        cands = [L]
    return cands


def _select_tiles(H, L, D, in_item, out_item, score_item, mask_mode, budget):
    """Pick (G heads per step, tq) so the TRUE footprint (double-buffered pipeline tiles
    + live f32 softmax intermediates) fits the generation-aware budget."""

    def footprint(G, tq):
        mask_tile = 0
        if mask_mode == 1:                      # single-head mask block (broadcast)
            mask_tile = tq * L
        elif mask_mode == 2:                    # G-head mask block
            mask_tile = G * tq * L
        pipelined = 2 * (G * tq * D * in_item           # q tile
                         + 2 * G * L * D * in_item      # k, v tiles (resident across qi)
                         + G * tq * D * out_item        # out tile
                         + G * tq * L * score_item      # score tile
                         + mask_tile)                   # int8 mask tile
        interm = 3 * G * tq * L * 4                     # live f32 s / p softmax intermediates
        return pipelined + interm

    h_divs = [d for d in range(H, 0, -1) if H % d == 0]
    best = None
    for tq in _tq_candidates(L):
        for G in h_divs:
            f = footprint(G, tq)
            if f <= budget:
                key = (G * tq, G)       # maximize work per step; tie-break fewer K/V bursts
                if best is None or key > best[0]:
                    best = (key, G, tq, f)
                break                    # largest feasible G for this tq found
    if best is None:
        G, tq = 1, min(_tq_candidates(L))
        return G, tq, footprint(G, tq)
    return best[1], best[2], best[3]


# ----------------------------------------------------------------------------
# wrapper
# ----------------------------------------------------------------------------
def scaled_dot_product_attention(q, k, v, mask=None):
    """q, k, v: [B, H, L, D]; mask broadcastable to [B, H, L, L] (True/nonzero = keep) or None.

    Returns (out [B, H, L, D], score [B, H, L, L]) matching the PyTorch module.
    """
    B, H, L, D = k.shape
    BH = B * H
    out_dtype = q.dtype
    score_dtype = q.dtype                  # match the torch module's output dtype

    in_item = jnp.dtype(q.dtype).itemsize
    out_item = jnp.dtype(out_dtype).itemsize
    score_item = jnp.dtype(score_dtype).itemsize

    # ---- mask normalization: int8 in HBM, shape analysis for index_map broadcasting ----
    m = None
    mb = mh = 0
    if mask is not None:
        m = jnp.asarray(mask)
        if m.dtype != jnp.bool_:
            m = m != 0
        m = m.astype(jnp.int8)             # 1 byte/elem in HBM instead of 4
        if m.ndim < 4:
            m = m.reshape((1,) * (4 - m.ndim) + m.shape)
        if m.shape[-2:] != (L, L):
            m = jnp.broadcast_to(m, m.shape[:2] + (L, L))
        mb, mh = int(m.shape[0]), int(m.shape[1])

    if mask is None:
        mask_mode = 0
    elif (mb, mh) in ((1, 1), (B, 1)):
        mask_mode = 1                      # single-head mask block per step
    else:
        mask_mode = 2                      # G-head mask block per step

    # ---- generation-aware VMEM budget & tile selection ----
    vmem_cap = _vmem_capacity_bytes()
    budget = int(vmem_cap * 0.40)          # ~51 MiB on v5e/v6e (128 MiB), ~26 MiB on v7x (64 MiB)
    G, tq, fp_bytes = _select_tiles(H, L, D, in_item, out_item, score_item, mask_mode, budget)

    grid = (BH // G, L // tq)

    qf = q.reshape(BH, L, D)
    kf = k.reshape(BH, L, D)
    vf = v.reshape(BH, L, D)

    q_spec = pl.BlockSpec((G, tq, D), lambda g, qi: (g, qi, 0))
    kv_spec = pl.BlockSpec((G, L, D), lambda g, qi: (g, 0, 0))   # constant over qi -> fetched once per g
    o_spec = pl.BlockSpec((G, tq, D), lambda g, qi: (g, qi, 0))
    s_spec = pl.BlockSpec((G, tq, L), lambda g, qi: (g, qi, 0))
    # TODO(synk): optionally pipeline_mode=pl.Buffered(3) on kv_spec (v5e/v6e headroom) to start
    # the per-head-group K/V burst two steps early.

    if mask is None:
        kernel = _sdpa_kernel_nomask
        in_specs = [q_spec, kv_spec, kv_spec]
        operands = (qf, kf, vf)
    else:
        if mb == 1 and mh == 1:
            # one shared [L, L] mask: never replicated in HBM
            mf = m.reshape(1, L, L)
            m_spec = pl.BlockSpec((1, tq, L), lambda g, qi: (0, qi, 0))
        elif mh == 1 and mb == B:
            # per-batch mask: broadcast over heads via index_map (G | H, all G heads of a
            # grid step belong to batch (g*G)//H)
            mf = m.reshape(B, L, L)
            m_spec = pl.BlockSpec((1, tq, L), lambda g, qi: ((g * G) // H, qi, 0))
        elif mb == 1 and mh == H:
            # per-head mask: broadcast over batch via index_map (no B*H*L*L materialization)
            mf = m.reshape(H, L, L)
            m_spec = pl.BlockSpec((G, tq, L), lambda g, qi: (g % (H // G), qi, 0))
        else:
            mf = jnp.broadcast_to(m, (B, H, L, L)).reshape(BH, L, L)
            m_spec = pl.BlockSpec((G, tq, L), lambda g, qi: (g, qi, 0))
        kernel = _sdpa_kernel_masked
        in_specs = [q_spec, kv_spec, kv_spec, m_spec]
        operands = (qf, kf, vf, mf)

    # Always set the scoped VMEM limit explicitly; clamp below the real device capacity
    # (v7x has only 64 MiB per TensorCore).
    est = fp_bytes + (2 << 20)                               # + compiler internal scratch slack
    vmem_ceiling = max(vmem_cap - (8 << 20), 32 << 20)
    vmem_limit = int(min(max(est, 32 << 20), vmem_ceiling))

    out_f, score_f = pl.pallas_call(
        kernel,
        out_shape=(
            jax.ShapeDtypeStruct((BH, L, D), out_dtype),
            jax.ShapeDtypeStruct((BH, L, L), score_dtype),
        ),
        grid_spec=pltpu.PrefetchScalarGridSpec(
            num_scalar_prefetch=0,
            grid=grid,
            in_specs=in_specs,
            out_specs=[o_spec, s_spec],
        ),
        compiler_params=pltpu.CompilerParams(
            # Shard only the head-group axis across TensorCores (v7x megacore): keeps the
            # per-group K/V tiles resident on one core instead of being DMA'd by both.
            dimension_semantics=("parallel", "arbitrary"),
            vmem_limit_bytes=vmem_limit),
    )(*operands)

    return out_f.reshape(B, H, L, D), score_f.reshape(B, H, L, L)


# ----------------------------------------------------------------------------
# self-test
# ----------------------------------------------------------------------------
if __name__ == "__main__":
    B, H, L, D = 2, 4, 8, 32
    key = jax.random.PRNGKey(0)
    kq, kk, kv_, km = jax.random.split(key, 4)

    q = jax.random.normal(kq, (B, H, L, D), dtype=jnp.float32)
    k = jax.random.normal(kk, (B, H, L, D), dtype=jnp.float32)
    v = jax.random.normal(kv_, (B, H, L, D), dtype=jnp.float32)
    # bool mask, True = keep; keep the diagonal so every row has at least one unmasked entry.
    mask = jax.random.bernoulli(km, 0.8, (B, H, L, L)) | jnp.eye(L, dtype=bool)

    def ref(q, k, v, mask):
        s = jnp.einsum("bhld,bhmd->bhlm", q, k) / math.sqrt(D)
        if mask is not None:
            s = jnp.where(mask, s, -jnp.inf)
        p = jax.nn.softmax(s, axis=-1)
        return jnp.einsum("bhlm,bhmd->bhld", p, v), p

    ATOL = RTOL = 2e-3

    # 1) full [B, H, L, L] mask
    out, score = scaled_dot_product_attention(q, k, v, mask)
    jax.block_until_ready((out, score))
    o_r, p_r = ref(q, k, v, mask)
    assert jnp.allclose(score, p_r, atol=ATOL, rtol=RTOL)
    assert jnp.allclose(out, o_r, atol=ATOL, rtol=RTOL)

    # 2) [B, 1, L, L] per-batch mask -> index_map broadcast over heads
    mask_b1 = mask[:, :1]
    out_b, score_b = scaled_dot_product_attention(q, k, v, mask_b1)
    jax.block_until_ready((out_b, score_b))
    o_rb, p_rb = ref(q, k, v, jnp.broadcast_to(mask_b1, (B, H, L, L)))
    assert jnp.allclose(score_b, p_rb, atol=ATOL, rtol=RTOL)
    assert jnp.allclose(out_b, o_rb, atol=ATOL, rtol=RTOL)

    # 3) [1, H, L, L] per-head mask -> index_map broadcast over batch (new path)
    mask_h1 = mask[:1]
    out_h, score_h = scaled_dot_product_attention(q, k, v, mask_h1)
    jax.block_until_ready((out_h, score_h))
    o_rh, p_rh = ref(q, k, v, jnp.broadcast_to(mask_h1, (B, H, L, L)))
    assert jnp.allclose(score_h, p_rh, atol=ATOL, rtol=RTOL)
    assert jnp.allclose(out_h, o_rh, atol=ATOL, rtol=RTOL)

    # 4) mask=None path (dedicated kernel, zero mask traffic)
    out_n, score_n = scaled_dot_product_attention(q, k, v, None)
    jax.block_until_ready((out_n, score_n))
    o_rn, p_rn = ref(q, k, v, None)
    assert jnp.allclose(score_n, p_rn, atol=ATOL, rtol=RTOL)
    assert jnp.allclose(out_n, o_rn, atol=ATOL, rtol=RTOL)

    print("KERNEL_OK")
</pallas_src>

<mosaic_0001>
module attributes {stable_mosaic.version = 11 : i64} {
  func.func @_sdpa_kernel_masked(%arg0: i32, %arg1: i32, %arg2: memref<4x8x32xf32, #tpu.memory_space<vmem>>, %arg3: memref<4x8x32xf32, #tpu.memory_space<vmem>>, %arg4: memref<4x8x32xf32, #tpu.memory_space<vmem>>, %arg5: memref<4x8x8xi8, #tpu.memory_space<vmem>>, %arg6: memref<4x8x32xf32, #tpu.memory_space<vmem>>, %arg7: memref<4x8x8xf32, #tpu.memory_space<vmem>>) attributes {dimension_semantics = [#tpu.dimension_semantics<parallel>, #tpu.dimension_semantics<arbitrary>], iteration_bounds = array<i64: 2, 1>, scalar_prefetch = 0 : i64, scratch_operands = 0 : i64, tpu.core_type = #tpu.core_type<tc>, window_params = [{transform_indices = @transform_0, window_bounds = array<i64: 4, 8, 32>}, {transform_indices = @transform_1, window_bounds = array<i64: 4, 8, 32>}, {transform_indices = @transform_2, window_bounds = array<i64: 4, 8, 32>}, {transform_indices = @transform_3, window_bounds = array<i64: 4, 8, 8>}, {transform_indices = @transform_4, window_bounds = array<i64: 4, 8, 32>}, {transform_indices = @transform_5, window_bounds = array<i64: 4, 8, 8>}]} {
    %c0 = arith.constant 0 : index
    %c0_0 = arith.constant 0 : index
    %c0_1 = arith.constant 0 : index
    %0 = vector.load %arg2[%c0, %c0_0, %c0_1] : memref<4x8x32xf32, #tpu.memory_space<vmem>>, vector<4x8x32xf32>
    %c0_2 = arith.constant 0 : index
    %c0_3 = arith.constant 0 : index
    %c0_4 = arith.constant 0 : index
    %1 = vector.load %arg3[%c0_2, %c0_3, %c0_4] : memref<4x8x32xf32, #tpu.memory_space<vmem>>, vector<4x8x32xf32>
    %c0_5 = arith.constant 0 : index
    %c0_6 = arith.constant 0 : index
    %c0_7 = arith.constant 0 : index
    %2 = vector.load %arg4[%c0_5, %c0_6, %c0_7] : memref<4x8x32xf32, #tpu.memory_space<vmem>>, vector<4x8x32xf32>
    %c0_8 = arith.constant 0 : index
    %c0_9 = arith.constant 0 : index
    %c0_10 = arith.constant 0 : index
    %3 = vector.load %arg5[%c0_8, %c0_9, %c0_10] : memref<4x8x8xi8, #tpu.memory_space<vmem>>, vector<4x8x8xi8>
    %cst = arith.constant 0.176776692 : f32
    %4 = vector.broadcast %cst : f32 to vector<4x8x32xf32>
    %5 = arith.mulf %0, %4 : vector<4x8x32xf32>
    %cst_11 = arith.constant dense<0.000000e+00> : vector<4x8x8xf32>
    %6 = tpu.matmul %5, %1, %cst_11 {dimension_numbers = #tpu.dot_dimension_numbers<[2], [2], [1], [1], [0, 0, 0, 1, 1, 1], [0], [0]>} : vector<4x8x32xf32>, vector<4x8x32xf32>, vector<4x8x8xf32> -> vector<4x8x8xf32>
    %c0_i8 = arith.constant 0 : i8
    %7 = vector.broadcast %c0_i8 : i8 to vector<4x8x8xi8>
    %8 = arith.cmpi ne, %3, %7 : vector<4x8x8xi8>
    %cst_12 = arith.constant 0xFF800000 : f32
    %9 = vector.broadcast %cst_12 : f32 to vector<4x8x8xf32>
    %10 = arith.select %8, %6, %9 : vector<4x8x8xi1>, vector<4x8x8xf32>
    %cst_13 = arith.constant dense<0xFF800000> : vector<4x8xf32>
    %11 = vector.multi_reduction <maximumf>, %10, %cst_13 [2] : vector<4x8x8xf32> to vector<4x8xf32>
    %12 = vector.shape_cast %11 : vector<4x8xf32> to vector<4x8x1xf32>
    %13 = vector.broadcast %12 : vector<4x8x1xf32> to vector<4x8x8xf32>
    %14 = arith.subf %10, %13 : vector<4x8x8xf32>
    %15 = math.exp %14 : vector<4x8x8xf32>
    %cst_14 = arith.constant dense<0.000000e+00> : vector<4x8xf32>
    %16 = vector.multi_reduction <add>, %15, %cst_14 [2] : vector<4x8x8xf32> to vector<4x8xf32>
    %17 = vector.shape_cast %16 : vector<4x8xf32> to vector<4x8x1xf32>
    %18 = tpu.reciprocal %17 : vector<4x8x1xf32> -> vector<4x8x1xf32>
    %19 = vector.broadcast %18 : vector<4x8x1xf32> to vector<4x8x8xf32>
    %20 = arith.mulf %15, %19 : vector<4x8x8xf32>
    %c0_15 = arith.constant 0 : index
    %c0_16 = arith.constant 0 : index
    %c0_17 = arith.constant 0 : index
    %21 = vector.load %arg7[%c0_15, %c0_16, %c0_17] : memref<4x8x8xf32, #tpu.memory_space<vmem>>, vector<4x8x8xf32>
    tpu.vector_store %arg7[%c0_15, %c0_16, %c0_17], %20 {strides = array<i32>} : memref<4x8x8xf32, #tpu.memory_space<vmem>>, vector<4x8x8xf32>,
    %cst_18 = arith.constant dense<0.000000e+00> : vector<4x8x32xf32>
    %22 = tpu.matmul %20, %2, %cst_18 {dimension_numbers = #tpu.dot_dimension_numbers<[2], [1], [1], [2], [0, 0, 0, 1, 1, 2], [0], [0]>} : vector<4x8x8xf32>, vector<4x8x32xf32>, vector<4x8x32xf32> -> vector<4x8x32xf32>
    %c0_19 = arith.constant 0 : index
    %c0_20 = arith.constant 0 : index
    %c0_21 = arith.constant 0 : index
    %23 = vector.load %arg6[%c0_19, %c0_20, %c0_21] : memref<4x8x32xf32, #tpu.memory_space<vmem>>, vector<4x8x32xf32>
    tpu.vector_store %arg6[%c0_19, %c0_20, %c0_21], %22 {strides = array<i32>} : memref<4x8x32xf32, #tpu.memory_space<vmem>>, vector<4x8x32xf32>,
    return
  }
  func.func @transform_0(%arg0: i32, %arg1: i32) -> (i32, i32, i32) {
    %c0_i32 = arith.constant 0 : i32
    %c0_i32_0 = arith.constant 0 : i32
    return %arg0, %arg1, %c0_i32 : i32, i32, i32
  }
  func.func @transform_1(%arg0: i32, %arg1: i32) -> (i32, i32, i32) {
    %c0_i32 = arith.constant 0 : i32
    %c0_i32_0 = arith.constant 0 : i32
    %c0_i32_1 = arith.constant 0 : i32
    return %arg0, %c0_i32, %c0_i32_0 : i32, i32, i32
  }
  func.func @transform_2(%arg0: i32, %arg1: i32) -> (i32, i32, i32) {
    %c0_i32 = arith.constant 0 : i32
    %c0_i32_0 = arith.constant 0 : i32
    %c0_i32_1 = arith.constant 0 : i32
    return %arg0, %c0_i32, %c0_i32_0 : i32, i32, i32
  }
  func.func @transform_3(%arg0: i32, %arg1: i32) -> (i32, i32, i32) {
    %c0_i32 = arith.constant 0 : i32
    %c0_i32_0 = arith.constant 0 : i32
    return %arg0, %arg1, %c0_i32 : i32, i32, i32
  }
  func.func @transform_4(%arg0: i32, %arg1: i32) -> (i32, i32, i32) {
    %c0_i32 = arith.constant 0 : i32
    %c0_i32_0 = arith.constant 0 : i32
    return %arg0, %arg1, %c0_i32 : i32, i32, i32
  }
  func.func @transform_5(%arg0: i32, %arg1: i32) -> (i32, i32, i32) {
    %c0_i32 = arith.constant 0 : i32
    %c0_i32_0 = arith.constant 0 : i32
    return %arg0, %arg1, %c0_i32 : i32, i32, i32
  }
}

</mosaic_0001>

<llo_original>
// kernel: tpu_custom_call.1
$region0: #{tpu_custom_call.1}
  #allocation0 [shape = 'u32[]', space=smem, size = 0x4, offset = 0x4, fixed_abs, tag = 'smem constant byte address 0x4 - core index']
  #allocation1 [shape = 'u32[72,128]{1,0:T(1,128)}', space=vmem, size = 0x9000, scoped, tag = 'internal scratch']
  %s0 = inlined_call_operand.hbm [shape: f32[8,8,32], index: 0, kind: input, shape index: {}]
  %s1 = inlined_call_operand.hbm [shape: f32[8,8,32], index: 1, kind: input, shape index: {}]
  %s2 = inlined_call_operand.hbm [shape: f32[8,8,32], index: 2, kind: input, shape index: {}]
  %s3 = inlined_call_operand.hbm [shape: s8[8,8,8], index: 3, kind: input, shape index: {}]
  %s4 = inlined_call_operand.hbm [shape: f32[8,8,32], index: 4, kind: output, shape index: {0}]
  %s5 = inlined_call_operand.hbm [shape: f32[8,8,8], index: 5, kind: output, shape index: {1}]
  %6 = xla_tuple %s4, %s5
  %s7 = sld [smem:[#allocation0]]
  $region73: #{tpu_custom_call.1} parent=0
    _
  %s9 = ssub.s32 1, %s7
  %s10 = scalar_select 0, %s9, %s7
  $region1: #{tpu_custom_call.1} parent=0
    #allocation2 [shape = 'u8[32768]{0}', space=vmem, size = 0x8000, scoped, tag = 'input window, operand 0']
    #allocation3 [shape = 's32[2]{0}', space=sflag, size = 0x8, scoped, tag = 'scoped memory for tpu_custom_call.1']
    #allocation4 [shape = 's32[2]{0}', space=sflag, size = 0x8, scoped, tag = 'scoped memory for tpu_custom_call.1']
    #allocation5 [shape = 'u8[32768]{0}', space=vmem, size = 0x8000, scoped, tag = 'input window, operand 1']
    #allocation6 [shape = 's32[2]{0}', space=sflag, size = 0x8, scoped, tag = 'scoped memory for tpu_custom_call.1']
    #allocation7 [shape = 'u8[32768]{0}', space=vmem, size = 0x8000, scoped, tag = 'input window, operand 2']
    #allocation8 [shape = 'u8[8192]{0}', space=vmem, size = 0x2000, scoped, tag = 'input window, operand 3']
    #allocation9 [shape = 's32[2]{0}', space=sflag, size = 0x8, scoped, tag = 'scoped memory for tpu_custom_call.1']
    #allocation10 [shape = 'u8[32768]{0}', space=vmem, size = 0x8000, scoped, tag = 'output window, operand 0']
    #allocation11 [shape = 'u8[32768]{0}', space=vmem, size = 0x8000, scoped, tag = 'output window, operand 1']
    #allocation12 [shape = 's32[2]{0}', space=sflag, size = 0x8, scoped, tag = 'scoped memory for tpu_custom_call.1']
    %11 = vsyncpa [#allocation3], 0
    %s12 = scalar_lea.sflag [#allocation3], 1
    %13 = vsyncpa %s12, 0
    %14 = vsyncpa [#allocation6], 0
    %s15 = scalar_lea.sflag [#allocation6], 1
    %16 = vsyncpa %s15, 0
    %17 = vsyncpa [#allocation9], 0
    %s18 = scalar_lea.sflag [#allocation9], 1
    %19 = vsyncpa %s18, 0
    %20 = vsyncpa [#allocation4], 0
    %s21 = scalar_lea.sflag [#allocation4], 1
    %22 = vsyncpa %s21, 0
    %23 = vsyncpa [#allocation12], 0
    %s24 = scalar_lea.sflag [#allocation12], 1
    %25 = vsyncpa %s24, 0
    loop: start=0, step=1, limit=4
    $region2: #{tpu_custom_call.1} parent=1 // loop_pre_header
      _
    $region3: #{tpu_custom_call.1} parent=1 // loop_header
      %s27 = sphi 0, %s31
      %p28 = scmp.ge.s32.totalorder %s27, 4
      %s34 = sphi 0, %s46
      %s35 = sphi 0, %s42
      %s36 = sphi 0, %s34
      %s37 = sphi 0, %s35
      %s38 = sphi 0, %s36
      %s39 = sphi 0, %s37
      %s51 = sphi 0, %s53
      %s54 = sphi 0, %s51
      %s55 = sphi 0, %s54
      %s71 = sphi 0, %s55
      %s77 = sphi 0, %s79
      %s80 = sphi 0, %s77
      %s81 = sphi 0, %s80
      %s97 = sphi 0, %s81
      %s103 = sphi 0, %s105
      %s106 = sphi 0, %s103
      %s107 = sphi 0, %s106
      %s123 = sphi 0, %s107
      %s131 = sphi 0, %s133
      %s134 = sphi 0, %s131
      %s135 = sphi 0, %s134
      %s151 = sphi 0, %s135
      %s159 = sphi 0, %s161
      %s162 = sphi 0, %s159
      %s163 = sphi 0, %s162
      %s179 = sphi 0, %s163
      %s187 = sphi 0, %s189
      %s190 = sphi 0, %s187
      %s191 = sphi 0, %s190
      %s207 = sphi 0, %s191
    $region4: #{tpu_custom_call.1} parent=1 // loop_header_branch
      %30 = sbr.rel (%p28) target = $region8
    $region5: #{tpu_custom_call.1} parent=1 // loop_body
      %s32 = ssub.s32 %s27, 1
      %s33 = ssub.s32 %s27, 2
      %s40 = sadd.s32 1, %s35
      %p41 = scmp.ge.s32.totalorder %s40, 1
      %s42 = scalar_select %p41, 0, %s40
      %s43 = sadd.s32 1, %s34
      %s44 = scalar_select %p41, %s43, %s34
      %p45 = scmp.ge.s32.totalorder %s44, 2
      %s46 = scalar_select %p45, 0, %s44
      %s47 = ssub.s32 %s34, %s46
      %s48 = ssub.s32 %s35, %s42
      %s49 = sor.u32 %s47, %s48
      %p50 = scmp.eq.s32.totalorder %s49, 0
      %s52 = sadd.s32 %s51, 1
      %s53 = scalar_select %p50, %s51, %s52
      %p56 = pneg %p50
      %p57 = scmp.eq.s32.totalorder %s27, 1
      %p58 = por %p56, %p57
      %p59 = scmp.ne.s32.totalorder %s51, %s54
      %p60 = scmp.eq.s32.totalorder %s27, 0
      %p61 = por %p59, %p60
      %p62 = scmp.ne.s32.totalorder %s51, %s54
      %p63 = scmp.eq.s32.totalorder %s32, 1
      %p64 = por %p62, %p63
      %p65 = scmp.ne.s32.totalorder %s54, %s55
      %p66 = scmp.eq.s32.totalorder %s32, 0
      %p67 = por %p65, %p66
      %p68 = scmp.ne.s32.totalorder %s54, %s55
      %p69 = scmp.eq.s32.totalorder %s33, 1
      %p70 = por %p68, %p69
      %p72 = scmp.ne.s32.totalorder %s55, %s71
      %p73 = scmp.eq.s32.totalorder %s33, 0
      %p74 = por %p72, %p73
      %s75 = ssub.s32 %s34, %s46
      %p76 = scmp.eq.s32.totalorder %s75, 0
      %s78 = sadd.s32 %s77, 1
      %s79 = scalar_select %p76, %s77, %s78
      %p82 = pneg %p76
      %p83 = scmp.eq.s32.totalorder %s27, 1
      %p84 = por %p82, %p83
      %p85 = scmp.ne.s32.totalorder %s77, %s80
      %p86 = scmp.eq.s32.totalorder %s27, 0
      %p87 = por %p85, %p86
      %p88 = scmp.ne.s32.totalorder %s77, %s80
      %p89 = scmp.eq.s32.totalorder %s32, 1
      %p90 = por %p88, %p89
      %p91 = scmp.ne.s32.totalorder %s80, %s81
      %p92 = scmp.eq.s32.totalorder %s32, 0
      %p93 = por %p91, %p92
      %p94 = scmp.ne.s32.totalorder %s80, %s81
      %p95 = scmp.eq.s32.totalorder %s33, 1
      %p96 = por %p94, %p95
      %p98 = scmp.ne.s32.totalorder %s81, %s97
      %p99 = scmp.eq.s32.totalorder %s33, 0
      %p100 = por %p98, %p99
      %s101 = ssub.s32 %s34, %s46
      %p102 = scmp.eq.s32.totalorder %s101, 0
      %s104 = sadd.s32 %s103, 1
      %s105 = scalar_select %p102, %s103, %s104
      %p108 = pneg %p102
      %p109 = scmp.eq.s32.totalorder %s27, 1
      %p110 = por %p108, %p109
      %p111 = scmp.ne.s32.totalorder %s103, %s106
      %p112 = scmp.eq.s32.totalorder %s27, 0
      %p113 = por %p111, %p112
      %p114 = scmp.ne.s32.totalorder %s103, %s106
      %p115 = scmp.eq.s32.totalorder %s32, 1
      %p116 = por %p114, %p115
      %p117 = scmp.ne.s32.totalorder %s106, %s107
      %p118 = scmp.eq.s32.totalorder %s32, 0
      %p119 = por %p117, %p118
      %p120 = scmp.ne.s32.totalorder %s106, %s107
      %p121 = scmp.eq.s32.totalorder %s33, 1
      %p122 = por %p120, %p121
      %p124 = scmp.ne.s32.totalorder %s107, %s123
      %p125 = scmp.eq.s32.totalorder %s33, 0
      %p126 = por %p124, %p125
      %s127 = ssub.s32 %s34, %s46
      %s128 = ssub.s32 %s35, %s42
      %s129 = sor.u32 %s127, %s128
      %p130 = scmp.eq.s32.totalorder %s129, 0
      %s132 = sadd.s32 %s131, 1
      %s133 = scalar_select %p130, %s131, %s132
      %p136 = pneg %p130
      %p137 = scmp.eq.s32.totalorder %s27, 1
      %p138 = por %p136, %p137
      %p139 = scmp.ne.s32.totalorder %s131, %s134
      %p140 = scmp.eq.s32.totalorder %s27, 0
      %p141 = por %p139, %p140
      %p142 = scmp.ne.s32.totalorder %s131, %s134
      %p143 = scmp.eq.s32.totalorder %s32, 1
      %p144 = por %p142, %p143
      %p145 = scmp.ne.s32.totalorder %s134, %s135
      %p146 = scmp.eq.s32.totalorder %s32, 0
      %p147 = por %p145, %p146
      %p148 = scmp.ne.s32.totalorder %s134, %s135
      %p149 = scmp.eq.s32.totalorder %s33, 1
      %p150 = por %p148, %p149
      %p152 = scmp.ne.s32.totalorder %s135, %s151
      %p153 = scmp.eq.s32.totalorder %s33, 0
      %p154 = por %p152, %p153
      %s155 = ssub.s32 %s34, %s46
      %s156 = ssub.s32 %s35, %s42
      %s157 = sor.u32 %s155, %s156
      %p158 = scmp.eq.s32.totalorder %s157, 0
      %s160 = sadd.s32 %s159, 1
      %s161 = scalar_select %p158, %s159, %s160
      %p164 = pneg %p158
      %p165 = scmp.eq.s32.totalorder %s27, 1
      %p166 = por %p164, %p165
      %p167 = scmp.ne.s32.totalorder %s159, %s162
      %p168 = scmp.eq.s32.totalorder %s27, 0
      %p169 = por %p167, %p168
      %p170 = scmp.ne.s32.totalorder %s159, %s162
      %p171 = scmp.eq.s32.totalorder %s32, 1
      %p172 = por %p170, %p171
      %p173 = scmp.ne.s32.totalorder %s162, %s163
      %p174 = scmp.eq.s32.totalorder %s32, 0
      %p175 = por %p173, %p174
      %p176 = scmp.ne.s32.totalorder %s162, %s163
      %p177 = scmp.eq.s32.totalorder %s33, 1
      %p178 = por %p176, %p177
      %p180 = scmp.ne.s32.totalorder %s163, %s179
      %p181 = scmp.eq.s32.totalorder %s33, 0
      %p182 = por %p180, %p181
      %s183 = ssub.s32 %s34, %s46
      %s184 = ssub.s32 %s35, %s42
      %s185 = sor.u32 %s183, %s184
      %p186 = scmp.eq.s32.totalorder %s185, 0
      %s188 = sadd.s32 %s187, 1
      %s189 = scalar_select %p186, %s187, %s188
      %p192 = pneg %p186
      %p193 = scmp.eq.s32.totalorder %s27, 1
      %p194 = por %p192, %p193
      %p195 = scmp.ne.s32.totalorder %s187, %s190
      %p196 = scmp.eq.s32.totalorder %s27, 0
      %p197 = por %p195, %p196
      %p198 = scmp.ne.s32.totalorder %s187, %s190
      %p199 = scmp.eq.s32.totalorder %s32, 1
      %p200 = por %p198, %p199
      %p201 = scmp.ne.s32.totalorder %s190, %s191
      %p202 = scmp.eq.s32.totalorder %s32, 0
      %p203 = por %p201, %p202
      %p204 = scmp.ne.s32.totalorder %s190, %s191
      %p205 = scmp.eq.s32.totalorder %s33, 1
      %p206 = por %p204, %p205
      %p208 = scmp.ne.s32.totalorder %s191, %s207
      %p209 = scmp.eq.s32.totalorder %s33, 0
      %p210 = por %p208, %p209
      %p211 = scmp.le.s32.totalorder 1, %s27
      %p212 = scmp.lt.s32.totalorder %s27, 3
      %p213 = pnand %p211, %p212
      %p214 = pneg %p213
      // Predicated region
      $region9: #{tpu_custom_call.1} parent=5 // pred_check
        _
      $region10: #{tpu_custom_call.1} parent=5 // pred_check_branch
        %216 = sbr.rel (%p213) target = $region12
      $region11: #{tpu_custom_call.1} parent=5 // pred_region
        %s217 = ssub.s32 %s27, 1
      $region12: #{tpu_custom_call.1} parent=5 // pred_fallthru
        _
      %p218 = scmp.lt.s32.totalorder %s27, 2
      // Predicated region
      $region13: #{tpu_custom_call.1} parent=5 // pred_check
        %p219 = pneg %p218
      $region14: #{tpu_custom_call.1} parent=5 // pred_check_branch
        %221 = sbr.rel (%p219) target = $region16
      $region15: #{tpu_custom_call.1} parent=5 // pred_region
        // Predicated region
        $region17: #{tpu_custom_call.1} parent=15 // pred_check
          %p222 = pneg %p61
        $region18: #{tpu_custom_call.1} parent=15 // pred_check_branch
          %224 = sbr.rel (%p222) target = $region20
        $region19: #{tpu_custom_call.1} parent=15 // pred_region
          %s225 = sand.u32 %s51, 1
          %s226 = scalar_lea.sflag [#allocation3], %s225
          %s227 = sand.u32 %s51, 1
          %s228 = smul.addr %s227, 32
          %s229 = scalar_lea.vmem [#allocation2], %s228
          %s230 = smul.u32 4, %s34
          %232 = vsyncadd %s226, 0
          %s233 = sadd.s32 %s35, %s230
          %s234 = smul.addr %s233, 8
          %s235 = scalar_lea.hbm %s0, %s234
          %s236 = sshll.u32 %s235, 4
          %s237 = int_to_ptr.hbm [resolvable:$true] %s236
          %s238 = sshll.u32 %s229, 4
          %s239 = int_to_ptr.vmem [resolvable:$true] %s238
          %244 = dma.hbm_to_vmem [thread:$0]  %s237, 512, %s239, %s226, 128, 128, 8
        $region20: #{tpu_custom_call.1} parent=15 // pred_fallthru
          _
        // Predicated region
        $region21: #{tpu_custom_call.1} parent=15 // pred_check
          %p245 = pneg %p87
        $region22: #{tpu_custom_call.1} parent=15 // pred_check_branch
          %247 = sbr.rel (%p245) target = $region24
        $region23: #{tpu_custom_call.1} parent=15 // pred_region
          %s248 = sand.u32 %s27, 1
          %s249 = scalar_lea.sflag [#allocation6], %s248
          %s250 = sand.u32 %s77, 1
          %s251 = smul.addr %s250, 32
          %s252 = scalar_lea.vmem [#allocation5], %s251
          %s253 = smul.u32 4, %s34
          %255 = vsyncadd %s249, 0
          %s256 = smul.addr %s253, 8
          %s257 = scalar_lea.hbm %s1, %s256
          %s258 = sshll.u32 %s257, 4
          %s259 = int_to_ptr.hbm [resolvable:$true] %s258
          %s260 = sshll.u32 %s252, 4
          %s261 = int_to_ptr.vmem [resolvable:$true] %s260
          %266 = dma.hbm_to_vmem [thread:$0]  %s259, 512, %s261, %s249, 128, 128, 8
        $region24: #{tpu_custom_call.1} parent=15 // pred_fallthru
          _
        // Predicated region
        $region25: #{tpu_custom_call.1} parent=15 // pred_check
          %p267 = pneg %p113
        $region26: #{tpu_custom_call.1} parent=15 // pred_check_branch
          %269 = sbr.rel (%p267) target = $region28
        $region27: #{tpu_custom_call.1} parent=15 // pred_region
          %s270 = sand.u32 %s27, 1
          %s271 = scalar_lea.sflag [#allocation6], %s270
          %s272 = sand.u32 %s103, 1
          %s273 = smul.addr %s272, 32
          %s274 = scalar_lea.vmem [#allocation7], %s273
          %s275 = smul.u32 4, %s34
          %277 = vsyncadd %s271, 0
          %s278 = smul.addr %s275, 8
          %s279 = scalar_lea.hbm %s2, %s278
          %s280 = sshll.u32 %s279, 4
          %s281 = int_to_ptr.hbm [resolvable:$true] %s280
          %s282 = sshll.u32 %s274, 4
          %s283 = int_to_ptr.vmem [resolvable:$true] %s282
          %288 = dma.hbm_to_vmem [thread:$0]  %s281, 512, %s283, %s271, 128, 128, 8
        $region28: #{tpu_custom_call.1} parent=15 // pred_fallthru
          _
        // Predicated region
        $region29: #{tpu_custom_call.1} parent=15 // pred_check
          %p289 = pneg %p141
        $region30: #{tpu_custom_call.1} parent=15 // pred_check_branch
          %291 = sbr.rel (%p289) target = $region32
        $region31: #{tpu_custom_call.1} parent=15 // pred_region
          %s292 = sand.u32 %s131, 1
          %s293 = scalar_lea.sflag [#allocation9], %s292
          %s294 = sand.u32 %s131, 1
          %s295 = smul.addr %s294, 8
          %s296 = scalar_lea.vmem [#allocation8], %s295
          %s297 = smul.u32 4, %s34
          %299 = vsyncadd %s293, 0
          %s300 = sadd.s32 %s35, %s297
          %s301 = smul.addr %s300, 2
          %s302 = scalar_lea.hbm %s3, %s301
          %s303 = sshll.u32 %s302, 4
          %s304 = int_to_ptr.hbm [resolvable:$true] %s303
          %s305 = sshll.u32 %s296, 4
          %s306 = int_to_ptr.vmem [resolvable:$true] %s305
          %311 = dma.hbm_to_vmem [thread:$0]  %s304, 128, %s306, %s293, 32, 32, 2
        $region32: #{tpu_custom_call.1} parent=15 // pred_fallthru
          _
      $region16: #{tpu_custom_call.1} parent=5 // pred_fallthru
        _
      %p312 = scmp.le.s32.totalorder 1, %s27
      %p313 = scmp.lt.s32.totalorder %s27, 3
      %p314 = pnand %p312, %p313
      %p315 = pneg %p314
      // Predicated region
      $region33: #{tpu_custom_call.1} parent=5 // pred_check
        _
      $region34: #{tpu_custom_call.1} parent=5 // pred_check_branch
        %317 = sbr.rel (%p314) target = $region36
      $region35: #{tpu_custom_call.1} parent=5 // pred_region
        %s318 = ssub.s32 %s27, 1
        %s319 = sand.u32 %s54, 1
        %s320 = scalar_lea.sflag [#allocation3], %s319
        %s321 = sand.u32 %s54, 1
        %s322 = smul.addr %s321, 32
        %s323 = scalar_lea.vmem [#allocation2], %s322
        // Predicated region
        $region37: #{tpu_custom_call.1} parent=35 // pred_check
          %p324 = pneg %p67
        $region38: #{tpu_custom_call.1} parent=35 // pred_check_branch
          %326 = sbr.rel (%p324) target = $region40
        $region39: #{tpu_custom_call.1} parent=35 // pred_region
          %328 = dma.done %s320, 512
        $region40: #{tpu_custom_call.1} parent=35 // pred_fallthru
          _
        %s329 = sand.u32 %s32, 1
        %s330 = scalar_lea.sflag [#allocation6], %s329
        %s331 = sand.u32 %s80, 1
        %s332 = smul.addr %s331, 32
        %s333 = scalar_lea.vmem [#allocation5], %s332
        // Predicated region
        $region41: #{tpu_custom_call.1} parent=35 // pred_check
          %p334 = pneg %p93
        $region42: #{tpu_custom_call.1} parent=35 // pred_check_branch
          %336 = sbr.rel (%p334) target = $region44
        $region43: #{tpu_custom_call.1} parent=35 // pred_region
          %338 = dma.done %s330, 512
        $region44: #{tpu_custom_call.1} parent=35 // pred_fallthru
          _
        %s339 = sand.u32 %s32, 1
        %s340 = scalar_lea.sflag [#allocation6], %s339
        %s341 = sand.u32 %s106, 1
        %s342 = smul.addr %s341, 32
        %s343 = scalar_lea.vmem [#allocation7], %s342
        // Predicated region
        $region45: #{tpu_custom_call.1} parent=35 // pred_check
          %p344 = pneg %p119
        $region46: #{tpu_custom_call.1} parent=35 // pred_check_branch
          %346 = sbr.rel (%p344) target = $region48
        $region47: #{tpu_custom_call.1} parent=35 // pred_region
          %348 = dma.done %s340, 512
        $region48: #{tpu_custom_call.1} parent=35 // pred_fallthru
          _
        %s349 = sand.u32 %s134, 1
        %s350 = scalar_lea.sflag [#allocation9], %s349
        %s351 = sand.u32 %s134, 1
        %s352 = smul.addr %s351, 8
        %s353 = scalar_lea.vmem [#allocation8], %s352
        // Predicated region
        $region49: #{tpu_custom_call.1} parent=35 // pred_check
          %p354 = pneg %p147
        $region50: #{tpu_custom_call.1} parent=35 // pred_check_branch
          %356 = sbr.rel (%p354) target = $region52
        $region51: #{tpu_custom_call.1} parent=35 // pred_region
          %358 = dma.done %s350, 128
        $region52: #{tpu_custom_call.1} parent=35 // pred_fallthru
          _
        %s359 = sand.u32 %s54, 1
        %s360 = scalar_lea.sflag [#allocation3], %s359
        %s361 = sand.u32 %s54, 1
        %s362 = smul.addr %s361, 32
        %s363 = scalar_lea.vmem [#allocation2], %s362
        %p364 = pneg %p67
        %p365 = pneg %p64
        %s366 = sand.u32 %s32, 1
        %s367 = scalar_lea.sflag [#allocation6], %s366
        %s368 = sand.u32 %s80, 1
        %s369 = smul.addr %s368, 32
        %s370 = scalar_lea.vmem [#allocation5], %s369
        %p371 = pneg %p93
        %p372 = pneg %p90
        %s373 = sand.u32 %s32, 1
        %s374 = scalar_lea.sflag [#allocation6], %s373
        %s375 = sand.u32 %s106, 1
        %s376 = smul.addr %s375, 32
        %s377 = scalar_lea.vmem [#allocation7], %s376
        %p378 = pneg %p119
        %p379 = pneg %p116
        %s380 = sand.u32 %s134, 1
        %s381 = scalar_lea.sflag [#allocation9], %s380
        %s382 = sand.u32 %s134, 1
        %s383 = smul.addr %s382, 8
        %s384 = scalar_lea.vmem [#allocation8], %s383
        %p385 = pneg %p147
        %p386 = pneg %p144
        %p387 = pneg %p175
        %p388 = pneg %p172
        %s389 = sand.u32 %s162, 1
        %s390 = scalar_lea.sflag [#allocation4], %s389
        %s391 = sand.u32 %s162, 1
        %s392 = smul.addr %s391, 32
        %s393 = scalar_lea.vmem [#allocation10], %s392
        %p394 = pneg %p203
        %p395 = pneg %p200
        %s396 = sand.u32 %s190, 1
        %s397 = scalar_lea.sflag [#allocation12], %s396
        %s398 = sand.u32 %s190, 1
        %s399 = smul.addr %s398, 32
        %s400 = scalar_lea.vmem [#allocation11], %s399
        %s401 = smul.u32 4, %s36
        %s402 = smul.u32 4, %s36
        %s403 = smul.u32 4, %s36
        %s404 = smul.u32 4, %s36
        %s405 = smul.u32 4, %s36
        %s406 = smul.u32 4, %s36
        %v409 = vld [vmem:[%s323] sm:$0xff]
        %v410 = vld [vmem:[%s323 + $0x8] sm:$0xff]
        %v411 = vld [vmem:[%s323 + $0x10] sm:$0xff]
        %v412 = vld [vmem:[%s323 + $0x18] sm:$0xff]
        %v413 = vld [vmem:[%s333] sm:$0xff]
        %v414 = vld [vmem:[%s333 + $0x8] sm:$0xff]
        %v415 = vld [vmem:[%s333 + $0x10] sm:$0xff]
        %v416 = vld [vmem:[%s333 + $0x18] sm:$0xff]
        %v417 = vld [vmem:[%s343] sm:$0xff]
        %v418 = vld [vmem:[%s343 + $0x8] sm:$0xff]
        %v419 = vld [vmem:[%s343 + $0x10] sm:$0xff]
        %v420 = vld [vmem:[%s343 + $0x18] sm:$0xff]
        %v421 = vld [vmem:[%s353] sm:$0x3]
        %v422 = vld [vmem:[%s353 + $0x2] sm:$0x3]
        %v423 = vld [vmem:[%s353 + $0x4] sm:$0x3]
        %v424 = vld [vmem:[%s353 + $0x6] sm:$0x3]
        %v425 = vmul.f32 %v409, 0.17677669
        %v426 = vmul.f32 %v410, 0.17677669
        %v427 = vmul.f32 %v411, 0.17677669
        %v428 = vmul.f32 %v412, 0.17677669
        %vm429 = vcmask 261120
        %v431 = vsel %vm429, %v425, 0
        %v434 = vsel %vm429, %v413, 0
        %436 = vmatpush.xpose.msra.mxu0 0.0
        %437 = vmatpush.xpose.msra.mxu0 0.0
        %438 = vmatpush.xpose.msra.mxu0 0.0
        %439 = vmatpush.xpose.msra.mxu0 0.0
        %440 = vmatpush.xpose.msra.mxu0 0.0
        %441 = vmatpush.xpose.msra.mxu0 0.0
        %442 = vmatpush.xpose.msra.mxu0 0.0
        %443 = vmatpush.xpose.msra.mxu0 0.0
        %444 = vmatpush.xpose.msra.mxu0 0.0
        %445 = vmatpush.xpose.msra.mxu0 0.0
        %446 = vmatpush.xpose.msra.mxu0 0.0
        %447 = vmatpush.xpose.msra.mxu0 0.0
        %448 = vmatpush.xpose.msra.mxu0 0.0
        %449 = vmatpush.xpose.msra.mxu0 0.0
        %450 = vmatpush.xpose.msra.mxu0 0.0
        %451 = vmatpush.xpose.msra.mxu0 %v434
        %452 = vmatmul.f32.gmra.mxu0 %v431
        %v453 = vpop.f32.mrf.mxu0
        %v454 = vadd.f32 0.0, %v453
        %455 = vdwg.mxu0
        %v457 = vsel %vm429, %v426, 0
        %v460 = vsel %vm429, %v414, 0
        %462 = vmatpush.xpose.msra.mxu0 0.0
        %463 = vmatpush.xpose.msra.mxu0 0.0
        %464 = vmatpush.xpose.msra.mxu0 0.0
        %465 = vmatpush.xpose.msra.mxu0 0.0
        %466 = vmatpush.xpose.msra.mxu0 0.0
        %467 = vmatpush.xpose.msra.mxu0 0.0
        %468 = vmatpush.xpose.msra.mxu0 0.0
        %469 = vmatpush.xpose.msra.mxu0 0.0
        %470 = vmatpush.xpose.msra.mxu0 0.0
        %471 = vmatpush.xpose.msra.mxu0 0.0
        %472 = vmatpush.xpose.msra.mxu0 0.0
        %473 = vmatpush.xpose.msra.mxu0 0.0
        %474 = vmatpush.xpose.msra.mxu0 0.0
        %475 = vmatpush.xpose.msra.mxu0 0.0
        %476 = vmatpush.xpose.msra.mxu0 0.0
        %477 = vmatpush.xpose.msra.mxu0 %v460
        %478 = vmatmul.f32.gmra.mxu0 %v457
        %v479 = vpop.f32.mrf.mxu0
        %v480 = vadd.f32 0.0, %v479
        %481 = vdwg.mxu0
        %v483 = vsel %vm429, %v427, 0
        %v486 = vsel %vm429, %v415, 0
        %488 = vmatpush.xpose.msra.mxu0 0.0
        %489 = vmatpush.xpose.msra.mxu0 0.0
        %490 = vmatpush.xpose.msra.mxu0 0.0
        %491 = vmatpush.xpose.msra.mxu0 0.0
        %492 = vmatpush.xpose.msra.mxu0 0.0
        %493 = vmatpush.xpose.msra.mxu0 0.0
        %494 = vmatpush.xpose.msra.mxu0 0.0
        %495 = vmatpush.xpose.msra.mxu0 0.0
        %496 = vmatpush.xpose.msra.mxu0 0.0
        %497 = vmatpush.xpose.msra.mxu0 0.0
        %498 = vmatpush.xpose.msra.mxu0 0.0
        %499 = vmatpush.xpose.msra.mxu0 0.0
        %500 = vmatpush.xpose.msra.mxu0 0.0
        %501 = vmatpush.xpose.msra.mxu0 0.0
        %502 = vmatpush.xpose.msra.mxu0 0.0
        %503 = vmatpush.xpose.msra.mxu0 %v486
        %504 = vmatmul.f32.gmra.mxu0 %v483
        %v505 = vpop.f32.mrf.mxu0
        %v506 = vadd.f32 0.0, %v505
        %507 = vdwg.mxu0
        %v509 = vsel %vm429, %v428, 0
        %v512 = vsel %vm429, %v416, 0
        %514 = vmatpush.xpose.msra.mxu0 0.0
        %515 = vmatpush.xpose.msra.mxu0 0.0
        %516 = vmatpush.xpose.msra.mxu0 0.0
        %517 = vmatpush.xpose.msra.mxu0 0.0
        %518 = vmatpush.xpose.msra.mxu0 0.0
        %519 = vmatpush.xpose.msra.mxu0 0.0
        %520 = vmatpush.xpose.msra.mxu0 0.0
        %521 = vmatpush.xpose.msra.mxu0 0.0
        %522 = vmatpush.xpose.msra.mxu0 0.0
        %523 = vmatpush.xpose.msra.mxu0 0.0
        %524 = vmatpush.xpose.msra.mxu0 0.0
        %525 = vmatpush.xpose.msra.mxu0 0.0
        %526 = vmatpush.xpose.msra.mxu0 0.0
        %527 = vmatpush.xpose.msra.mxu0 0.0
        %528 = vmatpush.xpose.msra.mxu0 0.0
        %529 = vmatpush.xpose.msra.mxu0 %v512
        %530 = vmatmul.f32.gmra.mxu0 %v509
        %v531 = vpop.f32.mrf.mxu0
        %v532 = vadd.f32 0.0, %v531
        %533 = vdwg.mxu0
        %vm534 = vnez %v421
        %vm535 = vnez %v422
        %vm536 = vnez %v423
        %vm537 = vnez %v424
        %v538 = vsel %vm534, 16843009, 0
        %v539 = vsel %vm535, 16843009, 0
        %v540 = vsel %vm536, 16843009, 0
        %v541 = vsel %vm537, 16843009, 0
        %v542 = vunpack.c.0.s8 %v538
        %v543 = vunpack.c.0.s8 %v539
        %v544 = vunpack.c.0.s8 %v540
        %v545 = vunpack.c.0.s8 %v541
        %vm546 = vcmp.ne.s32.totalorder %v542, 0
        %vm547 = vcmp.ne.s32.totalorder %v543, 0
        %vm548 = vcmp.ne.s32.totalorder %v544, 0
        %vm549 = vcmp.ne.s32.totalorder %v545, 0
        %v550 = vsel %vm546, %v454, -inf
        %v551 = vsel %vm547, %v480, -inf
        %v552 = vsel %vm548, %v506, -inf
        %v553 = vsel %vm549, %v532, -inf
        %vm554 = vcmask 64512
        %v555 = vsel %vm554, %v550, -inf
        %556 = vmax.xlane.f32.xlu0 %v555
        %v557 = vpop.xlane.xlu0 %556
        %v558 = vsel %vm554, %v551, -inf
        %559 = vmax.xlane.f32.xlu0 %v558
        %v560 = vpop.xlane.xlu0 %559
        %v561 = vsel %vm554, %v552, -inf
        %562 = vmax.xlane.f32.xlu0 %v561
        %v563 = vpop.xlane.xlu0 %562
        %v564 = vsel %vm554, %v553, -inf
        %565 = vmax.xlane.f32.xlu0 %v564
        %v566 = vpop.xlane.xlu0 %565
        %v567 = vsub.f32 %v550, %v557
        %v568 = vsub.f32 %v551, %v560
        %v569 = vsub.f32 %v552, %v563
        %v570 = vsub.f32 %v553, %v566
        %v571 = vmul.f32 %v567, 1.442695
        %v572 = vpow.pop %v571
        %v573 = vmul.f32 %v568, 1.442695
        %v574 = vpow.pop %v573
        %v575 = vmul.f32 %v569, 1.442695
        %v576 = vpow.pop %v575
        %v577 = vmul.f32 %v570, 1.442695
        %v578 = vpow.pop %v577
        %v579 = vsel %vm554, %v572, 0.0
        %580 = vadd.xlane.f32.xlu0 %v579
        %v581 = vpop.xlane.xlu0 %580
        %v582 = vsel %vm554, %v574, 0.0
        %583 = vadd.xlane.f32.xlu0 %v582
        %v584 = vpop.xlane.xlu0 %583
        %v585 = vsel %vm554, %v576, 0.0
        %586 = vadd.xlane.f32.xlu0 %v585
        %v587 = vpop.xlane.xlu0 %586
        %v588 = vsel %vm554, %v578, 0.0
        %589 = vadd.xlane.f32.xlu0 %v588
        %v590 = vpop.xlane.xlu0 %589
        %v591 = vrcp.pop %v581
        %v592 = vmul.f32 %v581, %v591
        %v593 = vsub.f32 1.0, %v592
        %v594 = vmul.f32 %v591, %v593
        %v595 = vadd.f32 %v591, %v594
        %vm596 = vweird.f32 %v581
        %vm597 = vweird.f32 %v591
        %vm598 = vmor %vm596, %vm597
        %v599 = vsel %vm598, %v591, %v595
        %v600 = vand.u32 2147483647, %v581
        %vm601 = vcmp.eq.f32.partialorder %v600, 8.507059e+37
        %v602 = vand.u32 %v581, 2147483648
        %v603 = vor.u32 1.1754944e-38, %v602
        %v604 = vsel %vm601, %v603, %v599
        %v605 = vrcp.pop %v584
        %v606 = vmul.f32 %v584, %v605
        %v607 = vsub.f32 1.0, %v606
        %v608 = vmul.f32 %v605, %v607
        %v609 = vadd.f32 %v605, %v608
        %vm610 = vweird.f32 %v584
        %vm611 = vweird.f32 %v605
        %vm612 = vmor %vm610, %vm611
        %v613 = vsel %vm612, %v605, %v609
        %v614 = vand.u32 2147483647, %v584
        %vm615 = vcmp.eq.f32.partialorder %v614, 8.507059e+37
        %v616 = vand.u32 %v584, 2147483648
        %v617 = vor.u32 1.1754944e-38, %v616
        %v618 = vsel %vm615, %v617, %v613
        %v619 = vrcp.pop %v587
        %v620 = vmul.f32 %v587, %v619
        %v621 = vsub.f32 1.0, %v620
        %v622 = vmul.f32 %v619, %v621
        %v623 = vadd.f32 %v619, %v622
        %vm624 = vweird.f32 %v587
        %vm625 = vweird.f32 %v619
        %vm626 = vmor %vm624, %vm625
        %v627 = vsel %vm626, %v619, %v623
        %v628 = vand.u32 2147483647, %v587
        %vm629 = vcmp.eq.f32.partialorder %v628, 8.507059e+37
        %v630 = vand.u32 %v587, 2147483648
        %v631 = vor.u32 1.1754944e-38, %v630
        %v632 = vsel %vm629, %v631, %v627
        %v633 = vrcp.pop %v590
        %v634 = vmul.f32 %v590, %v633
        %v635 = vsub.f32 1.0, %v634
        %v636 = vmul.f32 %v633, %v635
        %v637 = vadd.f32 %v633, %v636
        %vm638 = vweird.f32 %v590
        %vm639 = vweird.f32 %v633
        %vm640 = vmor %vm638, %vm639
        %v641 = vsel %vm640, %v633, %v637
        %v642 = vand.u32 2147483647, %v590
        %vm643 = vcmp.eq.f32.partialorder %v642, 8.507059e+37
        %v644 = vand.u32 %v590, 2147483648
        %v645 = vor.u32 1.1754944e-38, %v644
        %v646 = vsel %vm643, %v645, %v641
        %v647 = vmul.f32 %v572, %v604
        %v648 = vmul.f32 %v574, %v618
        %v649 = vmul.f32 %v576, %v632
        %v650 = vmul.f32 %v578, %v646
        %651 = vst.msk [vmem:[%s400] sm:$0xff] %vm554, %v647
        %652 = vst.msk [vmem:[%s400 + $0x8] sm:$0xff] %vm554, %v648
        %653 = vst.msk [vmem:[%s400 + $0x10] sm:$0xff] %vm554, %v649
        %654 = vst.msk [vmem:[%s400 + $0x18] sm:$0xff] %vm554, %v650
        %v656 = vsel %vm554, %v647, 0
        %658 = vmatpush.msra.mxu0 0.0
        %659 = vmatpush.msra.mxu0 0.0
        %660 = vmatpush.msra.mxu0 0.0
        %661 = vmatpush.msra.mxu0 0.0
        %662 = vmatpush.msra.mxu0 0.0
        %663 = vmatpush.msra.mxu0 0.0
        %664 = vmatpush.msra.mxu0 0.0
        %665 = vmatpush.msra.mxu0 0.0
        %666 = vmatpush.msra.mxu0 0.0
        %667 = vmatpush.msra.mxu0 0.0
        %668 = vmatpush.msra.mxu0 0.0
        %669 = vmatpush.msra.mxu0 0.0
        %670 = vmatpush.msra.mxu0 0.0
        %671 = vmatpush.msra.mxu0 0.0
        %672 = vmatpush.msra.mxu0 0.0
        %673 = vmatpush.msra.mxu0 %v417
        %674 = vmatmul.f32.gmra.mxu0 %v656
        %v675 = vpop.f32.mrf.mxu0
        %v676 = vadd.f32 0.0, %v675
        %677 = vdwg.mxu0
        %v679 = vsel %vm554, %v648, 0
        %681 = vmatpush.msra.mxu0 0.0
        %682 = vmatpush.msra.mxu0 0.0
        %683 = vmatpush.msra.mxu0 0.0
        %684 = vmatpush.msra.mxu0 0.0
        %685 = vmatpush.msra.mxu0 0.0
        %686 = vmatpush.msra.mxu0 0.0
        %687 = vmatpush.msra.mxu0 0.0
        %688 = vmatpush.msra.mxu0 0.0
        %689 = vmatpush.msra.mxu0 0.0
        %690 = vmatpush.msra.mxu0 0.0
        %691 = vmatpush.msra.mxu0 0.0
        %692 = vmatpush.msra.mxu0 0.0
        %693 = vmatpush.msra.mxu0 0.0
        %694 = vmatpush.msra.mxu0 0.0
        %695 = vmatpush.msra.mxu0 0.0
        %696 = vmatpush.msra.mxu0 %v418
        %697 = vmatmul.f32.gmra.mxu0 %v679
        %v698 = vpop.f32.mrf.mxu0
        %v699 = vadd.f32 0.0, %v698
        %700 = vdwg.mxu0
        %v702 = vsel %vm554, %v649, 0
        %704 = vmatpush.msra.mxu0 0.0
        %705 = vmatpush.msra.mxu0 0.0
        %706 = vmatpush.msra.mxu0 0.0
        %707 = vmatpush.msra.mxu0 0.0
        %708 = vmatpush.msra.mxu0 0.0
        %709 = vmatpush.msra.mxu0 0.0
        %710 = vmatpush.msra.mxu0 0.0
        %711 = vmatpush.msra.mxu0 0.0
        %712 = vmatpush.msra.mxu0 0.0
        %713 = vmatpush.msra.mxu0 0.0
        %714 = vmatpush.msra.mxu0 0.0
        %715 = vmatpush.msra.mxu0 0.0
        %716 = vmatpush.msra.mxu0 0.0
        %717 = vmatpush.msra.mxu0 0.0
        %718 = vmatpush.msra.mxu0 0.0
        %719 = vmatpush.msra.mxu0 %v419
        %720 = vmatmul.f32.gmra.mxu0 %v702
        %v721 = vpop.f32.mrf.mxu0
        %v722 = vadd.f32 0.0, %v721
        %723 = vdwg.mxu0
        %v725 = vsel %vm554, %v650, 0
        %727 = vmatpush.msra.mxu0 0.0
        %728 = vmatpush.msra.mxu0 0.0
        %729 = vmatpush.msra.mxu0 0.0
        %730 = vmatpush.msra.mxu0 0.0
        %731 = vmatpush.msra.mxu0 0.0
        %732 = vmatpush.msra.mxu0 0.0
        %733 = vmatpush.msra.mxu0 0.0
        %734 = vmatpush.msra.mxu0 0.0
        %735 = vmatpush.msra.mxu0 0.0
        %736 = vmatpush.msra.mxu0 0.0
        %737 = vmatpush.msra.mxu0 0.0
        %738 = vmatpush.msra.mxu0 0.0
        %739 = vmatpush.msra.mxu0 0.0
        %740 = vmatpush.msra.mxu0 0.0
        %741 = vmatpush.msra.mxu0 0.0
        %742 = vmatpush.msra.mxu0 %v420
        %743 = vmatmul.f32.gmra.mxu0 %v725
        %v744 = vpop.f32.mrf.mxu0
        %v745 = vadd.f32 0.0, %v744
        %746 = vdwg.mxu0
        %747 = vst.msk [vmem:[%s393] sm:$0xff] %vm429, %v676
        %748 = vst.msk [vmem:[%s393 + $0x8] sm:$0xff] %vm429, %v699
        %749 = vst.msk [vmem:[%s393 + $0x10] sm:$0xff] %vm429, %v722
        %750 = vst.msk [vmem:[%s393 + $0x18] sm:$0xff] %vm429, %v745
        %s751 = sand.u32 %s162, 1
        %s752 = scalar_lea.sflag [#allocation4], %s751
        %s753 = sand.u32 %s162, 1
        %s754 = smul.addr %s753, 32
        %s755 = scalar_lea.vmem [#allocation10], %s754
        %s756 = sand.u32 %s190, 1
        %s757 = scalar_lea.sflag [#allocation12], %s756
        %s758 = sand.u32 %s190, 1
        %s759 = smul.addr %s758, 32
        %s760 = scalar_lea.vmem [#allocation11], %s759
        // Predicated region
        $region53: #{tpu_custom_call.1} parent=35 // pred_check
          %p761 = pneg %p172
        $region54: #{tpu_custom_call.1} parent=35 // pred_check_branch
          %763 = sbr.rel (%p761) target = $region56
        $region55: #{tpu_custom_call.1} parent=35 // pred_region
          %s764 = smul.u32 4, %s36
          %766 = vsyncadd %s752, 0
          %s767 = sadd.s32 %s37, %s764
          %s768 = smul.addr %s767, 8
          %s769 = scalar_lea.hbm %s4, %s768
          %s770 = sshll.u32 %s755, 4
          %s771 = int_to_ptr.vmem [resolvable:$true] %s770
          %s772 = sshll.u32 %s769, 4
          %s773 = int_to_ptr.hbm [resolvable:$true] %s772
          %778 = dma.vmem_to_hbm [thread:$0]  %s771, 512, %s773, %s752, 128, 128, 8
        $region56: #{tpu_custom_call.1} parent=35 // pred_fallthru
          _
        // Predicated region
        $region57: #{tpu_custom_call.1} parent=35 // pred_check
          %p779 = pneg %p200
        $region58: #{tpu_custom_call.1} parent=35 // pred_check_branch
          %781 = sbr.rel (%p779) target = $region60
        $region59: #{tpu_custom_call.1} parent=35 // pred_region
          %s782 = smul.u32 4, %s36
          %784 = vsyncadd %s757, 0
          %s785 = sadd.s32 %s37, %s782
          %s786 = smul.addr %s785, 8
          %s787 = scalar_lea.hbm %s5, %s786
          %s788 = sshll.u32 %s760, 4
          %s789 = int_to_ptr.vmem [resolvable:$true] %s788
          %s790 = sshll.u32 %s787, 4
          %s791 = int_to_ptr.hbm [resolvable:$true] %s790
          %796 = dma.vmem_to_hbm [thread:$0]  %s789, 512, %s791, %s757, 128, 128, 8
        $region60: #{tpu_custom_call.1} parent=35 // pred_fallthru
          _
      $region36: #{tpu_custom_call.1} parent=5 // pred_fallthru
        _
      %p797 = scmp.le.s32.totalorder 2, %s27
      // Predicated region
      $region61: #{tpu_custom_call.1} parent=5 // pred_check
        %p798 = pneg %p797
      $region62: #{tpu_custom_call.1} parent=5 // pred_check_branch
        %800 = sbr.rel (%p798) target = $region64
      $region63: #{tpu_custom_call.1} parent=5 // pred_region
        %s801 = ssub.s32 %s27, 2
        // Predicated region
        $region65: #{tpu_custom_call.1} parent=63 // pred_check
          %p802 = pneg %p178
        $region66: #{tpu_custom_call.1} parent=63 // pred_check_branch
          %804 = sbr.rel (%p802) target = $region68
        $region67: #{tpu_custom_call.1} parent=63 // pred_region
          %s805 = sand.u32 %s163, 1
          %s806 = scalar_lea.sflag [#allocation4], %s805
          %s807 = sand.u32 %s163, 1
          %s808 = smul.addr %s807, 32
          %s809 = scalar_lea.vmem [#allocation10], %s808
          %811 = dma.done %s806, 512
        $region68: #{tpu_custom_call.1} parent=63 // pred_fallthru
          _
        // Predicated region
        $region69: #{tpu_custom_call.1} parent=63 // pred_check
          %p812 = pneg %p206
        $region70: #{tpu_custom_call.1} parent=63 // pred_check_branch
          %814 = sbr.rel (%p812) target = $region72
        $region71: #{tpu_custom_call.1} parent=63 // pred_region
          %s815 = sand.u32 %s191, 1
          %s816 = scalar_lea.sflag [#allocation12], %s815
          %s817 = sand.u32 %s191, 1
          %s818 = smul.addr %s817, 32
          %s819 = scalar_lea.vmem [#allocation11], %s818
          %821 = dma.done %s816, 512
        $region72: #{tpu_custom_call.1} parent=63 // pred_fallthru
          _
      $region64: #{tpu_custom_call.1} parent=5 // pred_fallthru
        _
    $region6: #{tpu_custom_call.1} parent=1 // loop_footer
      %s31 = sadd.s32 1, %s27
    $region7: #{tpu_custom_call.1} parent=1 // loop_footer_branch
      %26 = sbr.rel target = $region3
    $region8: #{tpu_custom_call.1} parent=1 // loop_exit
      _
    %822 = vsyncpa [#allocation3], 1
    %s823 = scalar_lea.sflag [#allocation3], 1
    %824 = vsyncpa %s823, 1
    %825 = vsyncpa [#allocation6], 1
    %s826 = scalar_lea.sflag [#allocation6], 1
    %827 = vsyncpa %s826, 1
    %828 = vsyncpa [#allocation9], 1
    %s829 = scalar_lea.sflag [#allocation9], 1
    %830 = vsyncpa %s829, 1
    %831 = vsyncpa [#allocation4], 1
    %s832 = scalar_lea.sflag [#allocation4], 1
    %833 = vsyncpa %s832, 1
    %834 = vsyncpa [#allocation12], 1
    %s835 = scalar_lea.sflag [#allocation12], 1
    %836 = vsyncpa %s835, 1

</llo_original>
